<compile_context>
chip_gen: v6e
topology: v6e:2x2x1
jax: 0.10.0
libtpu: 0.0.40
codegen_flags: <defaults>
</compile_context>

<pallas_src>
import functools
import math

import numpy as np
import jax
import jax.numpy as jnp
from jax.experimental import pallas as pl
from jax.experimental.pallas import tpu as pltpu


@functools.lru_cache(maxsize=1)
def _roll_matches_np_roll() -> bool:
    """One-time probe: does pltpu.roll follow np.roll (out[i] = in[i - shift])?"""
    def k(x_ref, o_ref):
        o_ref[...] = pltpu.roll(x_ref[...], shift=1, axis=1)

    x = jnp.tile(jnp.arange(128, dtype=jnp.float32), (8, 1))
    out = pl.pallas_call(k, out_shape=jax.ShapeDtypeStruct((8, 128), jnp.float32))(x)
    return bool(out[0, 1] == 0.0)   # np.roll([0..127], 1)[1] == 0


def _grid_reshape_kernel(dmap_ref, x_ref, o_ref, *, g, hw, roll_fwd):
    # x_ref, o_ref: (tile_n, hw) with hw = (g*g)^2; dmap_ref: (1, hw) int32 with
    # dmap[p] = w1(p) - h2(p) computed from the OUTPUT decomposition of p.
    x = x_ref[...]
    dmap = dmap_ref[...]
    out = x                      # lanes with d = w1 - h2 == 0 are already in place
    step = g * g - g             # dest_lane - src_lane per unit of d
    for d in range(-(g - 1), g):
        if d == 0:
            continue
        delta = d * step
        shift = (delta if roll_fwd else -delta) % hw
        rolled = pltpu.roll(x, shift=shift, axis=1)      # XLU full-width rotate
        out = jnp.where(dmap == d, rolled, out)          # VPU select
    o_ref[...] = out                                     # single unmasked wide store


def _round_up(x: int, m: int) -> int:
    return (x + m - 1) // m * m


def _pick_tile_n(n: int, row_bytes: int, sublane_tile: int,
                 max_block_bytes: int = 4 * 1024 * 1024) -> int:
    """Rows per block: ~4 MiB target; multiple of the sublane tile unless == n."""
    rows = max(1, max_block_bytes // max(row_bytes, 1))
    if rows >= n:
        return n
    rows = (rows // sublane_tile) * sublane_tile
    if rows == 0:
        rows = sublane_tile
    return min(rows, n)


def grid_reshape(x: jax.Array) -> jax.Array:
    """Pallas equivalent of GridReshaper.forward. x: (B, C, H, W), H == W == g*g."""
    b, c, h, w = x.shape
    if h != w:
        raise ValueError(f"Expected image width and height must be equal. Got {w} and {h}")
    g = int(round(math.sqrt(w)))
    if g * g != w:
        raise ValueError(f"Expected width to be a perfect square. Got {w}")

    n = b * c
    hw = h * w                       # g**4 lanes per plane
    x2 = x.reshape(n, hw)            # free bitcast-style reshape in HBM

    itemsize = jnp.dtype(x.dtype).itemsize
    sublane_tile = 8 * max(1, 4 // itemsize)            # 8 f32 / 16 bf16 / 32 int8
    row_bytes = _round_up(hw, 128) * itemsize
    tile_n = _pick_tile_n(n, row_bytes, sublane_tile)
    grid0 = pl.cdiv(n, tile_n)

    # VMEM budget: 2 pipelined buffers for input + 2 for output + resident dmap.
    block_padded = _round_up(tile_n, sublane_tile) * _round_up(hw, 128) * itemsize
    dmap_padded = 8 * _round_up(hw, 128) * 4
    need = 4 * block_padded + 2 * dmap_padded + (2 << 20)
    vmem_limit = int(min(48 << 20, max(need, 16 << 20)))   # 48 MiB cap: fits v7x too

    # Host-precomputed per-lane d = w1 - h2 map (avoids in-kernel int div/mod).
    p = np.arange(hw, dtype=np.int64)
    dmap = (((p // (g * g)) % g) - ((p // g) % g)).astype(np.int32).reshape(1, hw)
    dmap = jnp.asarray(dmap)

    kernel = functools.partial(_grid_reshape_kernel, g=g, hw=hw,
                               roll_fwd=_roll_matches_np_roll())

    out2 = pl.pallas_call(
        kernel,
        out_shape=jax.ShapeDtypeStruct((n, hw), x.dtype),
        grid=(grid0,),
        in_specs=[
            pl.BlockSpec((1, hw), lambda i: (0, 0)),        # dmap: resident, fetched once
            pl.BlockSpec((tile_n, hw), lambda i: (i, 0)),   # input planes
        ],
        out_specs=pl.BlockSpec((tile_n, hw), lambda i: (i, 0)),
        compiler_params=pltpu.CompilerParams(
            dimension_semantics=("parallel",),
            vmem_limit_bytes=vmem_limit,
        ),
        cost_estimate=pl.CostEstimate(
            flops=0, transcendentals=0,
            bytes_accessed=2 * x.size * itemsize,
        ),
    )(dmap, x2)

    return out2.reshape(b, c, h, w)


if __name__ == "__main__":
    key = jax.random.PRNGKey(0)
    B, C, H, W = 2, 4, 16, 16          # g = 4, matches module constraints
    x = jax.random.normal(key, (B, C, H, W), dtype=jnp.float32)

    out = jax.block_until_ready(grid_reshape(x))

    # Pure-JAX reference (mirrors the PyTorch reshape/permute/reshape exactly).
    g = int(round(math.sqrt(W)))
    ref = x.reshape(B, C, g, g, g, g).transpose(0, 1, 2, 4, 3, 5).reshape(B, C, H, W)

    assert out.shape == ref.shape and out.dtype == ref.dtype
    assert jnp.array_equal(out, ref), "mismatch vs reference"
    print("KERNEL_OK")
</pallas_src>

<mosaic_0001>
module attributes {stable_mosaic.version = 11 : i64} {
  func.func @k(%arg0: memref<8x128xf32, #tpu.memory_space<vmem>>, %arg1: memref<8x128xf32, #tpu.memory_space<vmem>>) attributes {dimension_semantics = [], scalar_prefetch = 0 : i64, scratch_operands = 0 : i64, tpu.core_type = #tpu.core_type<tc>} {
    %c0 = arith.constant 0 : index
    %c0_0 = arith.constant 0 : index
    %0 = vector.load %arg0[%c0, %c0_0] : memref<8x128xf32, #tpu.memory_space<vmem>>, vector<8x128xf32>
    %c1_i32 = arith.constant 1 : i32
    %1 = tpu.dynamic_rotate %0 by %c1_i32 dim 1 : vector<8x128xf32>, i32 -> vector<8x128xf32>
    %c0_1 = arith.constant 0 : index
    %c0_2 = arith.constant 0 : index
    %2 = vector.load %arg1[%c0_1, %c0_2] : memref<8x128xf32, #tpu.memory_space<vmem>>, vector<8x128xf32>
    tpu.vector_store %arg1[%c0_1, %c0_2], %1 {strides = array<i32>} : memref<8x128xf32, #tpu.memory_space<vmem>>, vector<8x128xf32>,
    return
  }
}

</mosaic_0001>

<llo_original>
// kernel: tpu_custom_call.1
$region0: #{tpu_custom_call.1}
  #allocation0 [shape = 'u32[]', space=smem, size = 0x4, offset = 0x4, fixed_abs, tag = 'smem constant byte address 0x4 - core index']
  #allocation1 [shape = 'u32[144,128]{1,0:T(1,128)}', space=vmem, size = 0x12000, scoped, tag = 'internal scratch']
  %s0 = inlined_call_operand.hbm [shape: f32[8,128], index: 0, kind: input, shape index: {}]
  %s1 = inlined_call_operand.hbm [shape: f32[8,128], index: 1, kind: output, shape index: {}]
  %s2 = sld [smem:[#allocation0]]
  $region18: #{tpu_custom_call.1} parent=0
    _
  %s4 = ssub.s32 1, %s2
  %s5 = scalar_select 0, %s4, %s2
  $region1: #{tpu_custom_call.1} parent=0
    #allocation2 [shape = 'u8[4096]{0}', space=vmem, size = 0x1000, scoped, tag = 'input window, operand 0, single buffered']
    #allocation3 [shape = 's32[1]{0}', space=sflag, size = 0x4, scoped, tag = 'scoped memory for tpu_custom_call.1']
    #allocation4 [shape = 's32[1]{0}', space=sflag, size = 0x4, scoped, tag = 'scoped memory for tpu_custom_call.1']
    #allocation5 [shape = 'u8[4096]{0}', space=vmem, size = 0x1000, scoped, tag = 'output window, operand 0, single buffered']
    %6 = vsyncpa [#allocation3], 0
    %7 = vsyncpa [#allocation4], 0
    // Predicated region
    $region2: #{tpu_custom_call.1} parent=1 // pred_check
      _
    $region3: #{tpu_custom_call.1} parent=1 // pred_check_branch
      %9 = sbr.rel (0) target = $region5
    $region4: #{tpu_custom_call.1} parent=1 // pred_region
      %s11 = ssub.s32 128, 128
      %12 = vsyncadd [#allocation3], %s11
      %s14 = sshll.u32 [#allocation2], 4
      %s15 = int_to_ptr.vmem [resolvable:$true] %s14
      %17 = dma.hbm_to_vmem [thread:$0]  %s0, 128, %s15, [#allocation3]
    $region5: #{tpu_custom_call.1} parent=1 // pred_fallthru
      _
    // Predicated region
    $region6: #{tpu_custom_call.1} parent=1 // pred_check
      _
    $region7: #{tpu_custom_call.1} parent=1 // pred_check_branch
      %19 = sbr.rel (0) target = $region9
    $region8: #{tpu_custom_call.1} parent=1 // pred_region
      %20 = dma.done [#allocation3], 128
    $region9: #{tpu_custom_call.1} parent=1 // pred_fallthru
      _
    %v21 = vld [vmem:[#allocation2] sm:$0xff]
    %22 = vrot.lane.b32.xlu0 %v21, 1
    %v23 = vpop.permute.xlu0 %22
    %24 = vst [vmem:[#allocation5] sm:$0xff] %v23
    // Predicated region
    $region10: #{tpu_custom_call.1} parent=1 // pred_check
      _
    $region11: #{tpu_custom_call.1} parent=1 // pred_check_branch
      %26 = sbr.rel (0) target = $region13
    $region12: #{tpu_custom_call.1} parent=1 // pred_region
      %s28 = ssub.s32 128, 128
      %29 = vsyncadd [#allocation4], %s28
      %s31 = sshll.u32 [#allocation5], 4
      %s32 = int_to_ptr.vmem [resolvable:$true] %s31
      %34 = dma.vmem_to_hbm [thread:$0]  %s32, 128, %s1, [#allocation4]
    $region13: #{tpu_custom_call.1} parent=1 // pred_fallthru
      _
    // Predicated region
    $region14: #{tpu_custom_call.1} parent=1 // pred_check
      _
    $region15: #{tpu_custom_call.1} parent=1 // pred_check_branch
      %36 = sbr.rel (0) target = $region17
    $region16: #{tpu_custom_call.1} parent=1 // pred_region
      %37 = dma.done [#allocation4], 128
    $region17: #{tpu_custom_call.1} parent=1 // pred_fallthru
      _
    %38 = vsyncpa [#allocation3], 1
    %39 = vsyncpa [#allocation4], 1

</llo_original>
